<compile_context>
chip_gen: v6e
topology: v6e:2x2x1
jax: 0.10.0
libtpu: 0.0.40
codegen_flags: <defaults>
</compile_context>

<pallas_src>
import jax
import jax.numpy as jnp
from jax.experimental import pallas as pl
from jax.experimental.pallas import tpu as pltpu

HIDDEN = 64


def _round_up(v, m):
    return (v + m - 1) // m * m


# ---------------------------------------------------------------------------
# Kernel 1: SAGEConv (mean aggregation) for one tile of node rows.
#   h = relu(A_tile @ x_full @ Wl + bl + x_tile @ Wr)
# ---------------------------------------------------------------------------
def _sage_conv_kernel(a_ref, xfull_ref, xrow_ref, wl_ref, bl_ref, wr_ref, h_ref):
    f32 = jnp.float32
    agg = jnp.dot(a_ref[...], xfull_ref[...], preferred_element_type=f32)
    h = (jnp.dot(agg.astype(jnp.bfloat16), wl_ref[...], preferred_element_type=f32)
         + bl_ref[...]
         + jnp.dot(xrow_ref[...], wr_ref[...], preferred_element_type=f32))
    h_ref[...] = jnp.maximum(h, 0.0).astype(h_ref.dtype)


# ---------------------------------------------------------------------------
# Kernel 2: SAGEConv + per-node edge-MLP projections for one tile of node rows.
#   h2    = relu(A_tile @ h1_full @ W2l + b2l + h1_tile @ W2r)
#   p_src = h2 @ W3s      p_dst = h2 @ W3d
# ---------------------------------------------------------------------------
def _sage_conv_proj_kernel(a_ref, hfull_ref, hrow_ref, wl_ref, bl_ref, wr_ref,
                           w3s_ref, w3d_ref, ps_ref, pd_ref):
    f32 = jnp.float32
    agg = jnp.dot(a_ref[...], hfull_ref[...], preferred_element_type=f32)
    h2 = (jnp.dot(agg.astype(jnp.bfloat16), wl_ref[...], preferred_element_type=f32)
          + bl_ref[...]
          + jnp.dot(hrow_ref[...], wr_ref[...], preferred_element_type=f32))
    h2 = jnp.maximum(h2, 0.0).astype(jnp.bfloat16)
    ps_ref[...] = jnp.dot(h2, w3s_ref[...], preferred_element_type=f32)
    pd_ref[...] = jnp.dot(h2, w3d_ref[...], preferred_element_type=f32)


def init_params(key, node_in_dim, edge_in_dim, hidden=HIDDEN):
    """Deterministic, PyTorch-Linear-style uniform init (synthetic weights)."""
    ks = jax.random.split(key, 10)

    def lin_w(k, fan_in, fan_out):
        lim = 1.0 / jnp.sqrt(jnp.float32(fan_in))
        return jax.random.uniform(k, (fan_in, fan_out), jnp.float32, -lim, lim)

    def lin_b(k, fan_in, fan_out):
        lim = 1.0 / jnp.sqrt(jnp.float32(fan_in))
        return jax.random.uniform(k, (1, fan_out), jnp.float32, -lim, lim)

    mlp_in = 2 * hidden + edge_in_dim
    # Full first-layer edge-MLP weight, split row-block-wise so the concat
    # [h_src, h_dst, edge_attr] @ W3 becomes h_src@W3s + h_dst@W3d + ea@W3e.
    w3 = lin_w(ks[6], mlp_in, hidden)
    return dict(
        # SAGEConv1 (lin_l has bias, lin_r has no bias, as in PyG)
        w1l=lin_w(ks[0], node_in_dim, hidden),
        b1l=lin_b(ks[1], node_in_dim, hidden),
        w1r=lin_w(ks[2], node_in_dim, hidden),
        # SAGEConv2
        w2l=lin_w(ks[3], hidden, hidden),
        b2l=lin_b(ks[4], hidden, hidden),
        w2r=lin_w(ks[5], hidden, hidden),
        # edge MLP layer 1 (row blocks of W3 — fixes the previous shape bug)
        w3s=w3[:hidden],                  # (64, 64)   acts on h_src
        w3d=w3[hidden:2 * hidden],        # (64, 64)   acts on h_dst
        w3e=w3[2 * hidden:],              # (edge_in, 64) acts on edge_attr
        b3=lin_b(ks[7], mlp_in, hidden),
        # edge MLP layer 2
        w4=lin_w(ks[8], hidden, 1),
        b4=lin_b(ks[9], hidden, 1),
    )


def edge_model_forward(x, edge_index, edge_attr, params):
    f32, bf16 = jnp.float32, jnp.bfloat16
    N, F = x.shape
    E = edge_index.shape[1]
    EF = edge_attr.shape[1]
    H = HIDDEN
    src = edge_index[0].astype(jnp.int32)
    dst = edge_index[1].astype(jnp.int32)

    # Tile sizes: >=256-row tiles at realistic sizes, adaptive for toy shapes.
    tm = 256 if N >= 256 else _round_up(N, 8)
    n_pad = _round_up(N, tm)
    te = 256 if E >= 256 else _round_up(E, 8)
    e_pad = _round_up(E, te)

    # --- plain-JAX glue: densify the graph into a mean-aggregation matrix ---
    cnt = jnp.zeros((n_pad, n_pad), f32).at[dst, src].add(1.0)
    deg = jnp.sum(cnt, axis=1, keepdims=True)
    a_mat = (cnt / jnp.maximum(deg, 1.0)).astype(bf16)

    x_pad = jnp.zeros((n_pad, F), bf16).at[:N].set(x.astype(bf16))
    ea_pad = jnp.zeros((e_pad, EF), f32).at[:E].set(edge_attr.astype(f32))
    src_pad = jnp.zeros((e_pad,), jnp.int32).at[:E].set(src)
    dst_pad = jnp.zeros((e_pad,), jnp.int32).at[:E].set(dst)

    node_cparams = pltpu.CompilerParams(
        dimension_semantics=("parallel",), vmem_limit_bytes=32 * 1024 * 1024)
    gn = n_pad // tm

    def w_res(shape):           # weight resident across all grid steps
        return pl.BlockSpec(shape, lambda i: (0, 0))

    # ---------------- SAGEConv 1 ----------------
    h1 = pl.pallas_call(
        _sage_conv_kernel,
        out_shape=jax.ShapeDtypeStruct((n_pad, H), bf16),
        grid=(gn,),
        in_specs=[
            pl.BlockSpec((tm, n_pad), lambda i: (i, 0)),   # A row tile (bf16)
            pl.BlockSpec((n_pad, F), lambda i: (0, 0)),    # x (full, resident)
            pl.BlockSpec((tm, F), lambda i: (i, 0)),       # x row tile
            w_res((F, H)), w_res((1, H)), w_res((F, H)),
        ],
        out_specs=pl.BlockSpec((tm, H), lambda i: (i, 0)),
        compiler_params=node_cparams,
    )(a_mat, x_pad, x_pad,
      params["w1l"].astype(bf16), params["b1l"], params["w1r"].astype(bf16))

    # -------- SAGEConv 2 + per-node edge-MLP projections --------
    p_src, p_dst = pl.pallas_call(
        _sage_conv_proj_kernel,
        out_shape=(jax.ShapeDtypeStruct((n_pad, H), f32),
                   jax.ShapeDtypeStruct((n_pad, H), f32)),
        grid=(gn,),
        in_specs=[
            pl.BlockSpec((tm, n_pad), lambda i: (i, 0)),   # A row tile
            pl.BlockSpec((n_pad, H), lambda i: (0, 0)),    # h1 (full, resident)
            pl.BlockSpec((tm, H), lambda i: (i, 0)),       # h1 row tile
            w_res((H, H)), w_res((1, H)), w_res((H, H)),
            w_res((H, H)), w_res((H, H)),
        ],
        out_specs=(pl.BlockSpec((tm, H), lambda i: (i, 0)),
                   pl.BlockSpec((tm, H), lambda i: (i, 0))),
        compiler_params=node_cparams,
    )(a_mat, h1, h1,
      params["w2l"].astype(bf16), params["b2l"], params["w2r"].astype(bf16),
      params["w3s"].astype(bf16), params["w3d"].astype(bf16))

    # ---------------- edge MLP over edge tiles ----------------
    def _edge_kernel(src_ref, dst_ref, ps_ref, pd_ref, ea_ref,
                     w3e_ref, b3_ref, w4t_ref, b4_ref, out_ref, z_ref):
        f32_ = jnp.float32
        e0 = pl.program_id(0) * te
        # dense part of the first MLP layer
        z_ref[...] = (jnp.dot(ea_ref[...], w3e_ref[...], preferred_element_type=f32_)
                      + b3_ref[...])

        # gather per-node projections via SMEM-prefetched indices
        def body(j, carry):
            s = src_ref[e0 + j]
            d = dst_ref[e0 + j]
            row = ps_ref[pl.ds(s, 1), :] + pd_ref[pl.ds(d, 1), :]
            z_ref[pl.ds(j, 1), :] = z_ref[pl.ds(j, 1), :] + row
            return carry

        jax.lax.fori_loop(0, te, body, 0)

        z = jnp.maximum(z_ref[...], 0.0)
        # (1, H) contracted with (TE, H) on H  ->  lane-dense (1, TE) logits row
        logits = jax.lax.dot_general(
            w4t_ref[...], z, (((1,), (1,)), ((), ())),
            preferred_element_type=f32_) + b4_ref[...]
        out_ref[...] = jax.nn.sigmoid(logits)

    ge = e_pad // te
    out = pl.pallas_call(
        _edge_kernel,
        out_shape=jax.ShapeDtypeStruct((1, e_pad), f32),
        grid_spec=pltpu.PrefetchScalarGridSpec(
            num_scalar_prefetch=2,
            grid=(ge,),
            in_specs=[
                pl.BlockSpec((n_pad, H), lambda e, s, d: (0, 0)),   # p_src resident
                pl.BlockSpec((n_pad, H), lambda e, s, d: (0, 0)),   # p_dst resident
                pl.BlockSpec((te, EF), lambda e, s, d: (e, 0)),     # edge_attr tile
                pl.BlockSpec((EF, H), lambda e, s, d: (0, 0)),      # W3e
                pl.BlockSpec((1, H), lambda e, s, d: (0, 0)),       # b3
                pl.BlockSpec((1, H), lambda e, s, d: (0, 0)),       # W4^T
                pl.BlockSpec((1, 1), lambda e, s, d: (0, 0)),       # b4
            ],
            out_specs=pl.BlockSpec((1, te), lambda e, s, d: (0, e)),
            scratch_shapes=[pltpu.VMEM((te, H), jnp.float32)],
        ),
        compiler_params=pltpu.CompilerParams(
            dimension_semantics=("parallel",),
            vmem_limit_bytes=32 * 1024 * 1024),
    )(src_pad, dst_pad, p_src, p_dst, ea_pad,
      params["w3e"], params["b3"], params["w4"].T, params["b4"])

    return out[0, :E]


def _reference_forward(x, edge_index, edge_attr, params):
    """Pure-JAX f32 reference with identical semantics (for verification)."""
    N = x.shape[0]
    src, dst = edge_index[0], edge_index[1]
    cnt = jnp.zeros((N, N), jnp.float32).at[dst, src].add(1.0)
    deg = jnp.maximum(jnp.sum(cnt, axis=1, keepdims=True), 1.0)
    a = cnt / deg
    h1 = jnp.maximum(a @ x @ params["w1l"] + params["b1l"] + x @ params["w1r"], 0.0)
    h2 = jnp.maximum(a @ h1 @ params["w2l"] + params["b2l"] + h1 @ params["w2r"], 0.0)
    z = jnp.maximum(h2[src] @ params["w3s"] + h2[dst] @ params["w3d"]
                    + edge_attr @ params["w3e"] + params["b3"], 0.0)
    logit = z @ params["w4"] + params["b4"]
    return jax.nn.sigmoid(logit)[:, 0]


if __name__ == "__main__":
    key = jax.random.PRNGKey(0)
    k_x, k_ei, k_ea, k_p = jax.random.split(key, 4)

    N, E = 16, 24
    node_in_dim, edge_in_dim = 8, 4

    x = jax.random.normal(k_x, (N, node_in_dim), jnp.float32)
    edge_index = jax.random.randint(k_ei, (2, E), 0, N, dtype=jnp.int32)
    edge_attr = jax.random.normal(k_ea, (E, edge_in_dim), jnp.float32)
    params = init_params(k_p, node_in_dim, edge_in_dim)

    out = jax.block_until_ready(edge_model_forward(x, edge_index, edge_attr, params))
    ref = _reference_forward(x, edge_index, edge_attr, params)

    assert out.shape == (E,)
    assert bool(jnp.all(jnp.isfinite(out)))
    assert bool(jnp.all((out >= 0.0) & (out <= 1.0)))
    assert bool(jnp.allclose(out, ref, atol=5e-2)), float(jnp.max(jnp.abs(out - ref)))
    print("KERNEL_OK")
</pallas_src>

<mosaic_0001>
module attributes {stable_mosaic.version = 11 : i64} {
  func.func @_sage_conv_kernel(%arg0: i32, %arg1: memref<16x16xbf16, #tpu.memory_space<vmem>>, %arg2: memref<16x8xbf16, #tpu.memory_space<vmem>>, %arg3: memref<16x8xbf16, #tpu.memory_space<vmem>>, %arg4: memref<8x64xbf16, #tpu.memory_space<vmem>>, %arg5: memref<1x64xf32, #tpu.memory_space<vmem>>, %arg6: memref<8x64xbf16, #tpu.memory_space<vmem>>, %arg7: memref<16x64xbf16, #tpu.memory_space<vmem>>) attributes {dimension_semantics = [#tpu.dimension_semantics<parallel>], iteration_bounds = array<i64: 1>, scalar_prefetch = 0 : i64, scratch_operands = 0 : i64, tpu.core_type = #tpu.core_type<tc>, window_params = [{transform_indices = @transform_0, window_bounds = array<i64: 16, 16>}, {pipeline_mode = #tpu.pipeline_mode<synchronous>, transform_indices = @transform_1, window_bounds = array<i64: 16, 8>}, {transform_indices = @transform_2, window_bounds = array<i64: 16, 8>}, {pipeline_mode = #tpu.pipeline_mode<synchronous>, transform_indices = @transform_3, window_bounds = array<i64: 8, 64>}, {pipeline_mode = #tpu.pipeline_mode<synchronous>, transform_indices = @transform_4, window_bounds = array<i64: 1, 64>}, {pipeline_mode = #tpu.pipeline_mode<synchronous>, transform_indices = @transform_5, window_bounds = array<i64: 8, 64>}, {transform_indices = @transform_6, window_bounds = array<i64: 16, 64>}]} {
    %c0 = arith.constant 0 : index
    %c0_0 = arith.constant 0 : index
    %0 = vector.load %arg1[%c0, %c0_0] : memref<16x16xbf16, #tpu.memory_space<vmem>>, vector<16x16xbf16>
    %c0_1 = arith.constant 0 : index
    %c0_2 = arith.constant 0 : index
    %1 = vector.load %arg2[%c0_1, %c0_2] : memref<16x8xbf16, #tpu.memory_space<vmem>>, vector<16x8xbf16>
    %cst = arith.constant dense<0.000000e+00> : vector<16x8xf32>
    %2 = tpu.matmul %0, %1, %cst {dimension_numbers = #tpu.dot_dimension_numbers<[1], [0], [0], [1], [0, 0, 1, 1], [], []>} : vector<16x16xbf16>, vector<16x8xbf16>, vector<16x8xf32> -> vector<16x8xf32>
    %3 = arith.truncf %2 : vector<16x8xf32> to vector<16x8xbf16>
    %c0_3 = arith.constant 0 : index
    %c0_4 = arith.constant 0 : index
    %4 = vector.load %arg4[%c0_3, %c0_4] : memref<8x64xbf16, #tpu.memory_space<vmem>>, vector<8x64xbf16>
    %cst_5 = arith.constant dense<0.000000e+00> : vector<16x64xf32>
    %5 = tpu.matmul %3, %4, %cst_5 {dimension_numbers = #tpu.dot_dimension_numbers<[1], [0], [0], [1], [0, 0, 1, 1], [], []>} : vector<16x8xbf16>, vector<8x64xbf16>, vector<16x64xf32> -> vector<16x64xf32>
    %c0_6 = arith.constant 0 : index
    %c0_7 = arith.constant 0 : index
    %6 = vector.load %arg5[%c0_6, %c0_7] : memref<1x64xf32, #tpu.memory_space<vmem>>, vector<1x64xf32>
    %7 = vector.broadcast %6 : vector<1x64xf32> to vector<16x64xf32>
    %8 = arith.addf %5, %7 : vector<16x64xf32>
    %c0_8 = arith.constant 0 : index
    %c0_9 = arith.constant 0 : index
    %9 = vector.load %arg3[%c0_8, %c0_9] : memref<16x8xbf16, #tpu.memory_space<vmem>>, vector<16x8xbf16>
    %c0_10 = arith.constant 0 : index
    %c0_11 = arith.constant 0 : index
    %10 = vector.load %arg6[%c0_10, %c0_11] : memref<8x64xbf16, #tpu.memory_space<vmem>>, vector<8x64xbf16>
    %cst_12 = arith.constant dense<0.000000e+00> : vector<16x64xf32>
    %11 = tpu.matmul %9, %10, %cst_12 {dimension_numbers = #tpu.dot_dimension_numbers<[1], [0], [0], [1], [0, 0, 1, 1], [], []>} : vector<16x8xbf16>, vector<8x64xbf16>, vector<16x64xf32> -> vector<16x64xf32>
    %12 = arith.addf %8, %11 : vector<16x64xf32>
    %cst_13 = arith.constant 0.000000e+00 : f32
    %13 = vector.broadcast %cst_13 : f32 to vector<16x64xf32>
    %14 = arith.maximumf %12, %13 : vector<16x64xf32>
    %15 = arith.truncf %14 : vector<16x64xf32> to vector<16x64xbf16>
    %c0_14 = arith.constant 0 : index
    %c0_15 = arith.constant 0 : index
    %16 = vector.load %arg7[%c0_14, %c0_15] : memref<16x64xbf16, #tpu.memory_space<vmem>>, vector<16x64xbf16>
    tpu.vector_store %arg7[%c0_14, %c0_15], %15 {strides = array<i32>} : memref<16x64xbf16, #tpu.memory_space<vmem>>, vector<16x64xbf16>,
    return
  }
  func.func @transform_0(%arg0: i32) -> (i32, i32) {
    %c0_i32 = arith.constant 0 : i32
    %c0_i32_0 = arith.constant 0 : i32
    return %arg0, %c0_i32 : i32, i32
  }
  func.func @transform_1(%arg0: i32) -> (i32, i32) {
    %c0_i32 = arith.constant 0 : i32
    %c0_i32_0 = arith.constant 0 : i32
    %c0_i32_1 = arith.constant 0 : i32
    return %c0_i32, %c0_i32_0 : i32, i32
  }
  func.func @transform_2(%arg0: i32) -> (i32, i32) {
    %c0_i32 = arith.constant 0 : i32
    %c0_i32_0 = arith.constant 0 : i32
    return %arg0, %c0_i32 : i32, i32
  }
  func.func @transform_3(%arg0: i32) -> (i32, i32) {
    %c0_i32 = arith.constant 0 : i32
    %c0_i32_0 = arith.constant 0 : i32
    %c0_i32_1 = arith.constant 0 : i32
    return %c0_i32, %c0_i32_0 : i32, i32
  }
  func.func @transform_4(%arg0: i32) -> (i32, i32) {
    %c0_i32 = arith.constant 0 : i32
    %c0_i32_0 = arith.constant 0 : i32
    %c0_i32_1 = arith.constant 0 : i32
    return %c0_i32, %c0_i32_0 : i32, i32
  }
  func.func @transform_5(%arg0: i32) -> (i32, i32) {
    %c0_i32 = arith.constant 0 : i32
    %c0_i32_0 = arith.constant 0 : i32
    %c0_i32_1 = arith.constant 0 : i32
    return %c0_i32, %c0_i32_0 : i32, i32
  }
  func.func @transform_6(%arg0: i32) -> (i32, i32) {
    %c0_i32 = arith.constant 0 : i32
    %c0_i32_0 = arith.constant 0 : i32
    return %arg0, %c0_i32 : i32, i32
  }
}

</mosaic_0001>

<llo_original>
// kernel: tpu_custom_call.1
$region0: #{tpu_custom_call.1}
  #allocation0 [shape = 'u32[]', space=smem, size = 0x4, offset = 0x4, fixed_abs, tag = 'smem constant byte address 0x4 - core index']
  #allocation1 [shape = 'u32[144,128]{1,0:T(1,128)}', space=vmem, size = 0x12000, scoped, tag = 'internal scratch']
  %s0 = inlined_call_operand.vmem [shape: bf16[16,16], index: 0, kind: input, shape index: {}]
  %s1 = inlined_call_operand.vmem [shape: bf16[16,8], index: 1, kind: input, shape index: {}]
  %s2 = inlined_call_operand.vmem [shape: bf16[16,8], index: 2, kind: input, shape index: {}]
  %s3 = inlined_call_operand.vmem [shape: bf16[8,64], index: 3, kind: input, shape index: {}]
  %s4 = inlined_call_operand.vmem [shape: f32[1,64], index: 4, kind: input, shape index: {}]
  %s5 = inlined_call_operand.vmem [shape: bf16[8,64], index: 5, kind: input, shape index: {}]
  %s6 = inlined_call_operand.hbm [shape: bf16[16,64], index: 6, kind: output, shape index: {}]
  %s7 = sld [smem:[#allocation0]]
  $region34: #{tpu_custom_call.1} parent=0
    _
  %s9 = ssub.s32 1, %s7
  %s10 = scalar_select 0, %s9, %s7
  $region1: #{tpu_custom_call.1} parent=0
    #allocation2 [shape = 'u8[4096]{0}', space=vmem, size = 0x1000, scoped, tag = 'output window, operand 0, single buffered']
    #allocation3 [shape = 's32[1]{0}', space=sflag, size = 0x4, scoped, tag = 'scoped memory for tpu_custom_call.1']
    %11 = vsyncpa [#allocation3], 0
    // Predicated region
    $region2: #{tpu_custom_call.1} parent=1 // pred_check
      _
    $region3: #{tpu_custom_call.1} parent=1 // pred_check_branch
      %13 = sbr.rel (0) target = $region5
    $region4: #{tpu_custom_call.1} parent=1 // pred_region
      _
    $region5: #{tpu_custom_call.1} parent=1 // pred_fallthru
      _
    // Predicated region
    $region6: #{tpu_custom_call.1} parent=1 // pred_check
      _
    $region7: #{tpu_custom_call.1} parent=1 // pred_check_branch
      %15 = sbr.rel (0) target = $region9
    $region8: #{tpu_custom_call.1} parent=1 // pred_region
      _
    $region9: #{tpu_custom_call.1} parent=1 // pred_fallthru
      _
    // Predicated region
    $region10: #{tpu_custom_call.1} parent=1 // pred_check
      _
    $region11: #{tpu_custom_call.1} parent=1 // pred_check_branch
      %17 = sbr.rel (0) target = $region13
    $region12: #{tpu_custom_call.1} parent=1 // pred_region
      _
    $region13: #{tpu_custom_call.1} parent=1 // pred_fallthru
      _
    // Predicated region
    $region14: #{tpu_custom_call.1} parent=1 // pred_check
      _
    $region15: #{tpu_custom_call.1} parent=1 // pred_check_branch
      %19 = sbr.rel (0) target = $region17
    $region16: #{tpu_custom_call.1} parent=1 // pred_region
      _
    $region17: #{tpu_custom_call.1} parent=1 // pred_fallthru
      _
    // Predicated region
    $region18: #{tpu_custom_call.1} parent=1 // pred_check
      _
    $region19: #{tpu_custom_call.1} parent=1 // pred_check_branch
      %21 = sbr.rel (0) target = $region21
    $region20: #{tpu_custom_call.1} parent=1 // pred_region
      _
    $region21: #{tpu_custom_call.1} parent=1 // pred_fallthru
      _
    // Predicated region
    $region22: #{tpu_custom_call.1} parent=1 // pred_check
      _
    $region23: #{tpu_custom_call.1} parent=1 // pred_check_branch
      %23 = sbr.rel (0) target = $region25
    $region24: #{tpu_custom_call.1} parent=1 // pred_region
      _
    $region25: #{tpu_custom_call.1} parent=1 // pred_fallthru
      _
    %v25 = vld [vmem:[%s0] sm:$0xf]
    %v26 = vld [vmem:[%s0 + $0x4] sm:$0xf]
    %v27 = vld [vmem:[%s1] sm:$0xf]
    %v28 = vld [vmem:[%s1 + $0x4] sm:$0xf]
    %v31 = vunpack.c.l.b16 %v25
    %v32 = vunpack.c.l.b16 %v26
    %v33 = vpack.c.b16 %v32, %v31
    %v36 = vunpack.c.l.b16 %v27
    %v37 = vunpack.c.l.b16 %v28
    %v38 = vpack.c.b16 %v37, %v36
    %vm40 = vcmask 130048
    %v42 = vsel %vm40, %v33, 0
    %44 = vmatprep.subr.bf16.mxu0 0
    %45 = vmatpush1.bf16.msra.mxu0 0
    %46 = vmatprep.subr.bf16.mxu0 0
    %47 = vmatpush1.bf16.msra.mxu0 0
    %48 = vmatprep.subr.bf16.mxu0 0
    %49 = vmatpush1.bf16.msra.mxu0 0
    %50 = vmatprep.subr.bf16.mxu0 0
    %51 = vmatpush1.bf16.msra.mxu0 0
    %52 = vmatprep.subr.bf16.mxu0 0
    %53 = vmatpush1.bf16.msra.mxu0 0
    %54 = vmatprep.subr.bf16.mxu0 0
    %55 = vmatpush1.bf16.msra.mxu0 0
    %56 = vmatprep.subr.bf16.mxu0 0
    %57 = vmatpush1.bf16.msra.mxu0 0
    %58 = vmatprep.subr.bf16.mxu0 0
    %59 = vmatpush1.bf16.msra.mxu0 %v38
    %60 = vmatprep.subr.bf16.mxu0 0
    %61 = vmatpush2.bf16.msra.mxu0 0
    %62 = vmatprep.subr.bf16.mxu0 0
    %63 = vmatpush2.bf16.msra.mxu0 0
    %64 = vmatprep.subr.bf16.mxu0 0
    %65 = vmatpush2.bf16.msra.mxu0 0
    %66 = vmatprep.subr.bf16.mxu0 0
    %67 = vmatpush2.bf16.msra.mxu0 0
    %68 = vmatprep.subr.bf16.mxu0 0
    %69 = vmatpush2.bf16.msra.mxu0 0
    %70 = vmatprep.subr.bf16.mxu0 0
    %71 = vmatpush2.bf16.msra.mxu0 0
    %72 = vmatprep.subr.bf16.mxu0 0
    %73 = vmatpush2.bf16.msra.mxu0 0
    %74 = vmatprep.subr.bf16.mxu0 0
    %75 = vmatpush2.bf16.msra.mxu0 0
    %76 = vmatprep.mubr.bf16.mxu0 0
    %77 = vmatmul.mubr.bf16.gmra.mxu0 %v42
    %v78 = vpop.f32.mrf.mxu0
    %v79 = vadd.f32 0.0, %v78
    %v80 = vpop.f32.mrf.mxu0
    %v81 = vpop.f32.mrf.mxu0
    %v82 = vadd.f32 0.0, %v81
    %v83 = vpop.f32.mrf.mxu0
    %84 = vdwg.mxu0
    %v85 = vpack.c.bf16 %v82, %v79
    %v86 = vld [vmem:[%s3] sm:$0xf]
    %v87 = vld [vmem:[%s4] sm:$0x1]
    %v89 = vlaneseq
    %v90 = vshrl.u32 %v89, 7
    %v91 = vsub.s32 0, %v90
    %v92 = vrot.slane %v87, %v91
    %vm94 = vcmask 64512
    %v96 = vsel %vm94, %v85, 0
    %vm98 = vcmask 1043456
    %v100 = vsel %vm98, %v86, 0
    %102 = vmatprep.subr.bf16.mxu0 0
    %103 = vmatpush1.bf16.msra.mxu0 0
    %104 = vmatprep.subr.bf16.mxu0 0
    %105 = vmatpush1.bf16.msra.mxu0 0
    %106 = vmatprep.subr.bf16.mxu0 0
    %107 = vmatpush1.bf16.msra.mxu0 0
    %108 = vmatprep.subr.bf16.mxu0 0
    %109 = vmatpush1.bf16.msra.mxu0 0
    %110 = vmatprep.subr.bf16.mxu0 0
    %111 = vmatpush1.bf16.msra.mxu0 0
    %112 = vmatprep.subr.bf16.mxu0 0
    %113 = vmatpush1.bf16.msra.mxu0 0
    %114 = vmatprep.subr.bf16.mxu0 0
    %115 = vmatpush1.bf16.msra.mxu0 0
    %116 = vmatprep.subr.bf16.mxu0 0
    %117 = vmatpush1.bf16.msra.mxu0 %v100
    %118 = vmatprep.subr.bf16.mxu0 0
    %119 = vmatpush2.bf16.msra.mxu0 0
    %120 = vmatprep.subr.bf16.mxu0 0
    %121 = vmatpush2.bf16.msra.mxu0 0
    %122 = vmatprep.subr.bf16.mxu0 0
    %123 = vmatpush2.bf16.msra.mxu0 0
    %124 = vmatprep.subr.bf16.mxu0 0
    %125 = vmatpush2.bf16.msra.mxu0 0
    %126 = vmatprep.subr.bf16.mxu0 0
    %127 = vmatpush2.bf16.msra.mxu0 0
    %128 = vmatprep.subr.bf16.mxu0 0
    %129 = vmatpush2.bf16.msra.mxu0 0
    %130 = vmatprep.subr.bf16.mxu0 0
    %131 = vmatpush2.bf16.msra.mxu0 0
    %132 = vmatprep.subr.bf16.mxu0 0
    %133 = vmatpush2.bf16.msra.mxu0 0
    %134 = vmatprep.mubr.bf16.mxu0 0
    %135 = vmatmul.mubr.bf16.gmra.mxu0 %v96
    %v136 = vpop.f32.mrf.mxu0
    %v137 = vadd.f32 %v92, %v136
    %v138 = vpop.f32.mrf.mxu0
    %v139 = vpop.f32.mrf.mxu0
    %v140 = vadd.f32 %v92, %v139
    %v141 = vpop.f32.mrf.mxu0
    %142 = vdwg.mxu0
    %v143 = vld [vmem:[%s2] sm:$0xf]
    %v144 = vld [vmem:[%s2 + $0x4] sm:$0xf]
    %v145 = vld [vmem:[%s5] sm:$0xf]
    %v148 = vunpack.c.l.b16 %v143
    %v149 = vunpack.c.l.b16 %v144
    %v150 = vpack.c.b16 %v149, %v148
    %v152 = vsel %vm94, %v150, 0
    %v155 = vsel %vm98, %v145, 0
    %157 = vmatprep.subr.bf16.mxu0 0
    %158 = vmatpush1.bf16.msra.mxu0 0
    %159 = vmatprep.subr.bf16.mxu0 0
    %160 = vmatpush1.bf16.msra.mxu0 0
    %161 = vmatprep.subr.bf16.mxu0 0
    %162 = vmatpush1.bf16.msra.mxu0 0
    %163 = vmatprep.subr.bf16.mxu0 0
    %164 = vmatpush1.bf16.msra.mxu0 0
    %165 = vmatprep.subr.bf16.mxu0 0
    %166 = vmatpush1.bf16.msra.mxu0 0
    %167 = vmatprep.subr.bf16.mxu0 0
    %168 = vmatpush1.bf16.msra.mxu0 0
    %169 = vmatprep.subr.bf16.mxu0 0
    %170 = vmatpush1.bf16.msra.mxu0 0
    %171 = vmatprep.subr.bf16.mxu0 0
    %172 = vmatpush1.bf16.msra.mxu0 %v155
    %173 = vmatprep.subr.bf16.mxu0 0
    %174 = vmatpush2.bf16.msra.mxu0 0
    %175 = vmatprep.subr.bf16.mxu0 0
    %176 = vmatpush2.bf16.msra.mxu0 0
    %177 = vmatprep.subr.bf16.mxu0 0
    %178 = vmatpush2.bf16.msra.mxu0 0
    %179 = vmatprep.subr.bf16.mxu0 0
    %180 = vmatpush2.bf16.msra.mxu0 0
    %181 = vmatprep.subr.bf16.mxu0 0
    %182 = vmatpush2.bf16.msra.mxu0 0
    %183 = vmatprep.subr.bf16.mxu0 0
    %184 = vmatpush2.bf16.msra.mxu0 0
    %185 = vmatprep.subr.bf16.mxu0 0
    %186 = vmatpush2.bf16.msra.mxu0 0
    %187 = vmatprep.subr.bf16.mxu0 0
    %188 = vmatpush2.bf16.msra.mxu0 0
    %189 = vmatprep.mubr.bf16.mxu0 0
    %190 = vmatmul.mubr.bf16.gmra.mxu0 %v152
    %v191 = vpop.f32.mrf.mxu0
    %v192 = vadd.f32 0.0, %v191
    %v193 = vpop.f32.mrf.mxu0
    %v194 = vpop.f32.mrf.mxu0
    %v195 = vadd.f32 0.0, %v194
    %v196 = vpop.f32.mrf.mxu0
    %197 = vdwg.mxu0
    %v198 = vadd.f32 %v137, %v192
    %v199 = vadd.f32 %v140, %v195
    %v200 = vmax.f32 %v198, 0.0
    %v201 = vmax.f32 %v199, 0.0
    %v202 = vpack.c.bf16 %v201, %v200
    %v204 = vunpack.c.l.b16 %v202
    %v205 = vunpack.c.h.b16 %v202
    %v206 = vpack.c.b16 %v204, %v204
    %v207 = vpack.c.b16 %v205, %v205
    %vm210 = vcmask 519168
    %211 = vst.msk [vmem:[#allocation2] sm:$0xf] %vm210, %v206
    %212 = vst.msk [vmem:[#allocation2 + $0x4] sm:$0xf] %vm210, %v207
    // Predicated region
    $region26: #{tpu_custom_call.1} parent=1 // pred_check
      _
    $region27: #{tpu_custom_call.1} parent=1 // pred_check_branch
      %214 = sbr.rel (0) target = $region29
    $region28: #{tpu_custom_call.1} parent=1 // pred_region
      %s216 = ssub.s32 128, 128
      %217 = vsyncadd [#allocation3], %s216
      %s218 = sshll.u32 [#allocation2], 4
      %s219 = int_to_ptr.vmem [resolvable:$true] %s218
      %224 = dma.vmem_to_hbm [thread:$0]  %s219, 128, %s6, [#allocation3], 64, 64, 4
    $region29: #{tpu_custom_call.1} parent=1 // pred_fallthru
      _
    // Predicated region
    $region30: #{tpu_custom_call.1} parent=1 // pred_check
      _
    $region31: #{tpu_custom_call.1} parent=1 // pred_check_branch
      %226 = sbr.rel (0) target = $region33
    $region32: #{tpu_custom_call.1} parent=1 // pred_region
      %227 = dma.done [#allocation3], 128
    $region33: #{tpu_custom_call.1} parent=1 // pred_fallthru
      _
    %228 = vsyncpa [#allocation3], 1

</llo_original>
